<compile_context>
chip_gen: v7x
topology: tpu7x:2x2x1
jax: 0.10.0
libtpu: 0.0.40
codegen_flags: <defaults>
</compile_context>

<pallas_src>
import functools

import jax
import jax.numpy as jnp
from jax.experimental import pallas as pl
from jax.experimental.pallas import tpu as pltpu

EPS = 1e-5  # nn.LayerNorm default


def _round_up(x, m):
    return ((x + m - 1) // m) * m


def _prenorm_kernel(x_ref, g_ref, b_ref, w_ref, wb_ref, o_ref, y_ref, *, d_true):
    """o = (LayerNorm(x) * gamma + beta) @ W[:, j-tile] + b_w[j-tile].

    y_ref is a VMEM scratch holding the normalized+affined activations; it is
    written once per row tile (j == 0) and reused for every output-column tile.
    """
    j = pl.program_id(1)

    @pl.when(j == 0)
    def _():
        x = x_ref[...].astype(jnp.float32)                   # (tm, D)
        # Single-pass statistics: sum and sum-of-squares (f32 throughout).
        s = jnp.sum(x, axis=-1, keepdims=True)               # (tm, 1)
        sq = jnp.sum(x * x, axis=-1, keepdims=True)          # (tm, 1)
        inv_d = 1.0 / d_true
        mean = s * inv_d
        var = sq * inv_d - mean * mean
        inv = jax.lax.rsqrt(var + EPS)

        g = g_ref[...].astype(jnp.float32)                   # (1, D)
        b = b_ref[...].astype(jnp.float32)                   # (1, D)
        # Store in the weight dtype so bf16 weights hit the MXU natively.
        y_ref[...] = ((x - mean) * inv * g + b).astype(y_ref.dtype)

    out = jnp.dot(y_ref[...], w_ref[...],
                  preferred_element_type=jnp.float32)        # (tm, tn)
    out = out + wb_ref[...].astype(jnp.float32)
    o_ref[...] = out.astype(o_ref.dtype)


@functools.partial(jax.jit, static_argnames=("tm", "tn"))
def prenorm_linear(x, gamma, beta, w, wb, *, tm=256, tn=512):
    """x: (B, N, D); gamma/beta: (D,); w: (D, Dout); wb: (Dout,)."""
    B, N, D = x.shape
    Dout = w.shape[1]
    M = B * N

    # Row tile: as large as requested, but no bigger than the (sublane-aligned)
    # row count; pad rows up to a multiple of the tile (ragged tail handling).
    tm_eff = min(tm, _round_up(M, 8))
    M_pad = _round_up(M, tm_eff)

    # Pad output columns to a multiple of 128 -> lane-dense stores. Tile with
    # tn when it divides evenly, otherwise keep the full (padded) width.
    Dout_pad = _round_up(Dout, 128)
    if Dout_pad >= tn and Dout_pad % tn == 0:
        tn_eff = tn
    else:
        tn_eff = Dout_pad

    x2 = x.reshape(M, D)
    if M_pad > M:
        x2 = jnp.pad(x2, ((0, M_pad - M), (0, 0)))
    g2 = gamma.reshape(1, D)
    b2 = beta.reshape(1, D)
    w2 = w
    wb2 = wb.reshape(1, Dout)
    if Dout_pad > Dout:
        w2 = jnp.pad(w2, ((0, 0), (0, Dout_pad - Dout)))
        wb2 = jnp.pad(wb2, ((0, 0), (0, Dout_pad - Dout)))

    grid = (M_pad // tm_eff, Dout_pad // tn_eff)

    itemsize = jnp.dtype(x.dtype).itemsize
    w_itemsize = jnp.dtype(w.dtype).itemsize
    bytes_accessed = (
        M_pad * D * itemsize                      # x (fetched once per row tile)
        + grid[0] * D * Dout_pad * w_itemsize     # weight re-streamed per row tile
        + M_pad * Dout_pad * itemsize             # out
        + 2 * D * itemsize + Dout_pad * itemsize  # gamma/beta/bias
    )
    cost = pl.CostEstimate(
        flops=2 * M_pad * D * Dout_pad + 8 * M_pad * D,
        transcendentals=M_pad,                    # rsqrt per row
        bytes_accessed=bytes_accessed,
    )

    kernel = functools.partial(_prenorm_kernel, d_true=D)

    out = pl.pallas_call(
        kernel,
        out_shape=jax.ShapeDtypeStruct((M_pad, Dout_pad), x.dtype),
        grid_spec=pltpu.PrefetchScalarGridSpec(
            num_scalar_prefetch=0,
            grid=grid,
            in_specs=[
                pl.BlockSpec((tm_eff, D), lambda i, j: (i, 0)),    # x rows
                pl.BlockSpec((1, D), lambda i, j: (0, 0)),         # gamma
                pl.BlockSpec((1, D), lambda i, j: (0, 0)),         # beta
                pl.BlockSpec((D, tn_eff), lambda i, j: (0, j)),    # weight cols
                pl.BlockSpec((1, tn_eff), lambda i, j: (0, j)),    # bias cols
            ],
            out_specs=pl.BlockSpec((tm_eff, tn_eff), lambda i, j: (i, j)),
            scratch_shapes=[pltpu.VMEM((tm_eff, D), w.dtype)],     # normalized acts
        ),
        compiler_params=pltpu.CompilerParams(
            # Row tiles are independent (megacore); column axis reuses the
            # per-row-tile LayerNorm scratch, so it must stay "arbitrary".
            dimension_semantics=("parallel", "arbitrary"),
            vmem_limit_bytes=64 * 1024 * 1024,
        ),
        cost_estimate=cost,
    )(x2, g2, b2, w2, wb2)

    return out[:M, :Dout].reshape(B, N, Dout)


def _reference(x, gamma, beta, w, wb):
    xf = x.astype(jnp.float32)
    mean = jnp.mean(xf, axis=-1, keepdims=True)
    var = jnp.mean((xf - mean) ** 2, axis=-1, keepdims=True)
    xn = (xf - mean) / jnp.sqrt(var + EPS)
    y = xn * gamma + beta
    return (y @ w.astype(jnp.float32) + wb).astype(x.dtype)


if __name__ == "__main__":
    B, N, D = 2, 8, 32
    key = jax.random.PRNGKey(0)
    kx, kw, kb = jax.random.split(key, 3)

    x = jax.random.normal(kx, (B, N, D), dtype=jnp.float32)

    # Deterministic parameter init (synthetic, matching module shapes):
    # nn.LayerNorm(dim): gamma=ones(dim), beta=zeros(dim); fn = Linear(dim, dim)
    gamma = jnp.ones((D,), jnp.float32)
    beta = jnp.zeros((D,), jnp.float32)
    w = jax.random.normal(kw, (D, D), dtype=jnp.float32) * 0.05
    wb = jax.random.normal(kb, (D,), dtype=jnp.float32) * 0.01

    out = prenorm_linear(x, gamma, beta, w, wb)
    jax.block_until_ready(out)

    ref = _reference(x, gamma, beta, w, wb)
    assert out.shape == (B, N, D)
    assert jnp.allclose(out, ref, atol=1e-4, rtol=1e-4), "mismatch vs reference"
    print("KERNEL_OK")
</pallas_src>

<mosaic_0001>
module attributes {stable_mosaic.version = 11 : i64} {
  func.func @_prenorm_kernel(%arg0: i32, %arg1: i32, %arg2: memref<16x32xf32, #tpu.memory_space<vmem>>, %arg3: memref<1x32xf32, #tpu.memory_space<vmem>>, %arg4: memref<1x32xf32, #tpu.memory_space<vmem>>, %arg5: memref<32x128xf32, #tpu.memory_space<vmem>>, %arg6: memref<1x128xf32, #tpu.memory_space<vmem>>, %arg7: memref<16x128xf32, #tpu.memory_space<vmem>>, %arg8: memref<16x32xf32, #tpu.memory_space<vmem>>) attributes {dimension_semantics = [#tpu.dimension_semantics<parallel>, #tpu.dimension_semantics<arbitrary>], iteration_bounds = array<i64: 1, 1>, scalar_prefetch = 0 : i64, scratch_operands = 1 : i64, tpu.core_type = #tpu.core_type<tc>, window_params = [{transform_indices = @transform_0, window_bounds = array<i64: 16, 32>}, {pipeline_mode = #tpu.pipeline_mode<synchronous>, transform_indices = @transform_1, window_bounds = array<i64: 1, 32>}, {pipeline_mode = #tpu.pipeline_mode<synchronous>, transform_indices = @transform_2, window_bounds = array<i64: 1, 32>}, {transform_indices = @transform_3, window_bounds = array<i64: 32, 128>}, {transform_indices = @transform_4, window_bounds = array<i64: 1, 128>}, {transform_indices = @transform_5, window_bounds = array<i64: 16, 128>}]} {
    %c0_i32 = arith.constant 0 : i32
    %0 = arith.cmpi eq, %arg1, %c0_i32 : i32
    %1 = arith.extui %0 : i1 to i32
    %c0_i32_0 = arith.constant 0 : i32
    %2 = arith.cmpi ne, %1, %c0_i32_0 : i32
    scf.if %2 {
      %c0_8 = arith.constant 0 : index
      %c0_9 = arith.constant 0 : index
      %10 = vector.load %arg2[%c0_8, %c0_9] : memref<16x32xf32, #tpu.memory_space<vmem>>, vector<16x32xf32>
      %cst_10 = arith.constant dense<0.000000e+00> : vector<16xf32>
      %11 = vector.multi_reduction <add>, %10, %cst_10 [1] : vector<16x32xf32> to vector<16xf32>
      %12 = vector.shape_cast %11 : vector<16xf32> to vector<16x1xf32>
      %13 = arith.mulf %10, %10 : vector<16x32xf32>
      %cst_11 = arith.constant dense<0.000000e+00> : vector<16xf32>
      %14 = vector.multi_reduction <add>, %13, %cst_11 [1] : vector<16x32xf32> to vector<16xf32>
      %15 = vector.shape_cast %14 : vector<16xf32> to vector<16x1xf32>
      %cst_12 = arith.constant 3.125000e-02 : f32
      %16 = vector.broadcast %cst_12 : f32 to vector<16x1xf32>
      %17 = arith.mulf %12, %16 : vector<16x1xf32>
      %cst_13 = arith.constant 3.125000e-02 : f32
      %18 = vector.broadcast %cst_13 : f32 to vector<16x1xf32>
      %19 = arith.mulf %15, %18 : vector<16x1xf32>
      %20 = arith.mulf %17, %17 : vector<16x1xf32>
      %21 = arith.subf %19, %20 : vector<16x1xf32>
      %cst_14 = arith.constant 9.99999974E-6 : f32
      %22 = vector.broadcast %cst_14 : f32 to vector<16x1xf32>
      %23 = arith.addf %21, %22 : vector<16x1xf32>
      %24 = math.rsqrt %23 : vector<16x1xf32>
      %c0_15 = arith.constant 0 : index
      %c0_16 = arith.constant 0 : index
      %25 = vector.load %arg3[%c0_15, %c0_16] : memref<1x32xf32, #tpu.memory_space<vmem>>, vector<1x32xf32>
      %c0_17 = arith.constant 0 : index
      %c0_18 = arith.constant 0 : index
      %26 = vector.load %arg4[%c0_17, %c0_18] : memref<1x32xf32, #tpu.memory_space<vmem>>, vector<1x32xf32>
      %27 = vector.broadcast %17 : vector<16x1xf32> to vector<16x32xf32>
      %28 = arith.subf %10, %27 : vector<16x32xf32>
      %29 = vector.broadcast %24 : vector<16x1xf32> to vector<16x32xf32>
      %30 = arith.mulf %28, %29 : vector<16x32xf32>
      %31 = vector.broadcast %25 : vector<1x32xf32> to vector<16x32xf32>
      %32 = arith.mulf %30, %31 : vector<16x32xf32>
      %33 = vector.broadcast %26 : vector<1x32xf32> to vector<16x32xf32>
      %34 = arith.addf %32, %33 : vector<16x32xf32>
      %c0_19 = arith.constant 0 : index
      %c0_20 = arith.constant 0 : index
      %35 = vector.load %arg8[%c0_19, %c0_20] : memref<16x32xf32, #tpu.memory_space<vmem>>, vector<16x32xf32>
      tpu.vector_store %arg8[%c0_19, %c0_20], %34 {strides = array<i32>} : memref<16x32xf32, #tpu.memory_space<vmem>>, vector<16x32xf32>,
    } else {
    }
    %c0 = arith.constant 0 : index
    %c0_1 = arith.constant 0 : index
    %3 = vector.load %arg8[%c0, %c0_1] : memref<16x32xf32, #tpu.memory_space<vmem>>, vector<16x32xf32>
    %c0_2 = arith.constant 0 : index
    %c0_3 = arith.constant 0 : index
    %4 = vector.load %arg5[%c0_2, %c0_3] : memref<32x128xf32, #tpu.memory_space<vmem>>, vector<32x128xf32>
    %cst = arith.constant dense<0.000000e+00> : vector<16x128xf32>
    %5 = tpu.matmul %3, %4, %cst {dimension_numbers = #tpu.dot_dimension_numbers<[1], [0], [0], [1], [0, 0, 1, 1], [], []>} : vector<16x32xf32>, vector<32x128xf32>, vector<16x128xf32> -> vector<16x128xf32>
    %c0_4 = arith.constant 0 : index
    %c0_5 = arith.constant 0 : index
    %6 = vector.load %arg6[%c0_4, %c0_5] : memref<1x128xf32, #tpu.memory_space<vmem>>, vector<1x128xf32>
    %7 = vector.broadcast %6 : vector<1x128xf32> to vector<16x128xf32>
    %8 = arith.addf %5, %7 : vector<16x128xf32>
    %c0_6 = arith.constant 0 : index
    %c0_7 = arith.constant 0 : index
    %9 = vector.load %arg7[%c0_6, %c0_7] : memref<16x128xf32, #tpu.memory_space<vmem>>, vector<16x128xf32>
    tpu.vector_store %arg7[%c0_6, %c0_7], %8 {strides = array<i32>} : memref<16x128xf32, #tpu.memory_space<vmem>>, vector<16x128xf32>,
    return
  }
  func.func @transform_0(%arg0: i32, %arg1: i32) -> (i32, i32) {
    %c0_i32 = arith.constant 0 : i32
    %c0_i32_0 = arith.constant 0 : i32
    return %arg0, %c0_i32 : i32, i32
  }
  func.func @transform_1(%arg0: i32, %arg1: i32) -> (i32, i32) {
    %c0_i32 = arith.constant 0 : i32
    %c0_i32_0 = arith.constant 0 : i32
    %c0_i32_1 = arith.constant 0 : i32
    return %c0_i32, %c0_i32_0 : i32, i32
  }
  func.func @transform_2(%arg0: i32, %arg1: i32) -> (i32, i32) {
    %c0_i32 = arith.constant 0 : i32
    %c0_i32_0 = arith.constant 0 : i32
    %c0_i32_1 = arith.constant 0 : i32
    return %c0_i32, %c0_i32_0 : i32, i32
  }
  func.func @transform_3(%arg0: i32, %arg1: i32) -> (i32, i32) {
    %c0_i32 = arith.constant 0 : i32
    %c0_i32_0 = arith.constant 0 : i32
    return %c0_i32, %arg1 : i32, i32
  }
  func.func @transform_4(%arg0: i32, %arg1: i32) -> (i32, i32) {
    %c0_i32 = arith.constant 0 : i32
    %c0_i32_0 = arith.constant 0 : i32
    return %c0_i32, %arg1 : i32, i32
  }
  func.func @transform_5(%arg0: i32, %arg1: i32) -> (i32, i32) {
    %c0_i32 = arith.constant 0 : i32
    return %arg0, %arg1 : i32, i32
  }
}

</mosaic_0001>

<llo_original>
// kernel: prenorm_linear.1
$region0: #{prenorm_linear.1}
  #allocation0 [shape = 'u32[]', space=smem, size = 0x4, offset = 0x4, fixed_abs, tag = 'smem constant byte address 0x4 - core index']
  #allocation1 [shape = 'u32[144,128]{1,0:T(1,128)}', space=vmem, size = 0x12000, scoped, tag = 'internal scratch']
  #allocation2 [shape = 'f32[16,32]{1,0:T(8,128)}', space=vmem, size = 0x2000, scoped, tag = 'scratch operand']
  %s0 = inlined_call_operand.hbm [shape: f32[16,32], index: 0, kind: input, shape index: {}]
  %s1 = inlined_call_operand.hbm [shape: f32[1,32], index: 1, kind: input, shape index: {}]
  %s2 = inlined_call_operand.hbm [shape: f32[1,32], index: 2, kind: input, shape index: {}]
  %s3 = inlined_call_operand.hbm [shape: f32[32,128], index: 3, kind: input, shape index: {}]
  %s4 = inlined_call_operand.hbm [shape: f32[1,128], index: 4, kind: input, shape index: {}]
  %s5 = inlined_call_operand.hbm [shape: f32[16,128], index: 5, kind: output, shape index: {}]
  %s6 = sld [smem:[#allocation0]]
  $region54: #{prenorm_linear.1} parent=0
    _
  %s8 = ssub.s32 1, %s6
  %s9 = scalar_select 0, %s8, %s6
  $region1: #{prenorm_linear.1} parent=0
    #allocation3 [shape = 'u8[8192]{0}', space=vmem, size = 0x2000, scoped, tag = 'input window, operand 0, single buffered']
    #allocation4 [shape = 's32[1]{0}', space=sflag, size = 0x4, scoped, tag = 'scoped memory for prenorm_linear.1']
    #allocation5 [shape = 's32[1]{0}', space=sflag, size = 0x4, scoped, tag = 'scoped memory for prenorm_linear.1']
    #allocation6 [shape = 'u8[512]{0}', space=vmem, size = 0x400, scoped, tag = 'input window, operand 1, single buffered']
    #allocation7 [shape = 's32[1]{0}', space=sflag, size = 0x4, scoped, tag = 'scoped memory for prenorm_linear.1']
    #allocation8 [shape = 'u8[512]{0}', space=vmem, size = 0x400, scoped, tag = 'input window, operand 2, single buffered']
    #allocation9 [shape = 'u8[16384]{0}', space=vmem, size = 0x4000, scoped, tag = 'input window, operand 3, single buffered']
    #allocation10 [shape = 's32[1]{0}', space=sflag, size = 0x4, scoped, tag = 'scoped memory for prenorm_linear.1']
    #allocation11 [shape = 'u8[512]{0}', space=vmem, size = 0x400, scoped, tag = 'input window, operand 4, single buffered']
    #allocation12 [shape = 'u8[8192]{0}', space=vmem, size = 0x2000, scoped, tag = 'output window, operand 0, single buffered']
    %10 = vsyncpa [#allocation4], 0
    %11 = vsyncpa [#allocation7], 0
    %12 = vsyncpa [#allocation10], 0
    %13 = vsyncpa [#allocation5], 0
    // Predicated region
    $region2: #{prenorm_linear.1} parent=1 // pred_check
      _
    $region3: #{prenorm_linear.1} parent=1 // pred_check_branch
      %15 = sbr.rel (0) target = $region5
    $region4: #{prenorm_linear.1} parent=1 // pred_region
      %s17 = ssub.s32 256, 256
      %18 = vsyncadd [#allocation4], %s17
      %s19 = sshll.u32 [#allocation3], 4
      %s20 = int_to_ptr.vmem [resolvable:$true] %s19
      %25 = dma.hbm_to_vmem [thread:$0]  %s0, 256, %s20, [#allocation4], 128, 128, 8
    $region5: #{prenorm_linear.1} parent=1 // pred_fallthru
      _
    // Predicated region
    $region6: #{prenorm_linear.1} parent=1 // pred_check
      _
    $region7: #{prenorm_linear.1} parent=1 // pred_check_branch
      %27 = sbr.rel (0) target = $region9
    $region8: #{prenorm_linear.1} parent=1 // pred_region
      %s29 = ssub.s32 16, 16
      %30 = vsyncadd [#allocation7], %s29
      %s32 = sshll.u32 [#allocation6], 4
      %s33 = int_to_ptr.vmem [resolvable:$true] %s32
      %35 = dma.hbm_to_vmem [thread:$0]  %s1, 16, %s33, [#allocation7]
    $region9: #{prenorm_linear.1} parent=1 // pred_fallthru
      _
    // Predicated region
    $region10: #{prenorm_linear.1} parent=1 // pred_check
      _
    $region11: #{prenorm_linear.1} parent=1 // pred_check_branch
      %37 = sbr.rel (0) target = $region13
    $region12: #{prenorm_linear.1} parent=1 // pred_region
      %s39 = ssub.s32 16, 16
      %40 = vsyncadd [#allocation7], %s39
      %s42 = sshll.u32 [#allocation8], 4
      %s43 = int_to_ptr.vmem [resolvable:$true] %s42
      %45 = dma.hbm_to_vmem [thread:$0]  %s2, 16, %s43, [#allocation7]
    $region13: #{prenorm_linear.1} parent=1 // pred_fallthru
      _
    // Predicated region
    $region14: #{prenorm_linear.1} parent=1 // pred_check
      _
    $region15: #{prenorm_linear.1} parent=1 // pred_check_branch
      %47 = sbr.rel (0) target = $region17
    $region16: #{prenorm_linear.1} parent=1 // pred_region
      %s49 = ssub.s32 512, 512
      %50 = vsyncadd [#allocation10], %s49
      %s51 = sshll.u32 [#allocation9], 4
      %s52 = int_to_ptr.vmem [resolvable:$true] %s51
      %57 = dma.hbm_to_vmem [thread:$0]  %s3, 512, %s52, [#allocation10], 128, 128, 8
    $region17: #{prenorm_linear.1} parent=1 // pred_fallthru
      _
    // Predicated region
    $region18: #{prenorm_linear.1} parent=1 // pred_check
      _
    $region19: #{prenorm_linear.1} parent=1 // pred_check_branch
      %59 = sbr.rel (0) target = $region21
    $region20: #{prenorm_linear.1} parent=1 // pred_region
      %s61 = ssub.s32 16, 16
      %62 = vsyncadd [#allocation10], %s61
      %s64 = sshll.u32 [#allocation11], 4
      %s65 = int_to_ptr.vmem [resolvable:$true] %s64
      %67 = dma.hbm_to_vmem [thread:$0]  %s4, 16, %s65, [#allocation10]
    $region21: #{prenorm_linear.1} parent=1 // pred_fallthru
      _
    // Predicated region
    $region22: #{prenorm_linear.1} parent=1 // pred_check
      _
    $region23: #{prenorm_linear.1} parent=1 // pred_check_branch
      %69 = sbr.rel (0) target = $region25
    $region24: #{prenorm_linear.1} parent=1 // pred_region
      %70 = dma.done [#allocation4], 256
    $region25: #{prenorm_linear.1} parent=1 // pred_fallthru
      _
    // Predicated region
    $region26: #{prenorm_linear.1} parent=1 // pred_check
      _
    $region27: #{prenorm_linear.1} parent=1 // pred_check_branch
      %72 = sbr.rel (0) target = $region29
    $region28: #{prenorm_linear.1} parent=1 // pred_region
      %73 = dma.done [#allocation7], 16
    $region29: #{prenorm_linear.1} parent=1 // pred_fallthru
      _
    // Predicated region
    $region30: #{prenorm_linear.1} parent=1 // pred_check
      _
    $region31: #{prenorm_linear.1} parent=1 // pred_check_branch
      %75 = sbr.rel (0) target = $region33
    $region32: #{prenorm_linear.1} parent=1 // pred_region
      %76 = dma.done [#allocation7], 16
    $region33: #{prenorm_linear.1} parent=1 // pred_fallthru
      _
    // Predicated region
    $region34: #{prenorm_linear.1} parent=1 // pred_check
      _
    $region35: #{prenorm_linear.1} parent=1 // pred_check_branch
      %78 = sbr.rel (0) target = $region37
    $region36: #{prenorm_linear.1} parent=1 // pred_region
      %79 = dma.done [#allocation10], 512
    $region37: #{prenorm_linear.1} parent=1 // pred_fallthru
      _
    // Predicated region
    $region38: #{prenorm_linear.1} parent=1 // pred_check
      _
    $region39: #{prenorm_linear.1} parent=1 // pred_check_branch
      %81 = sbr.rel (0) target = $region41
    $region40: #{prenorm_linear.1} parent=1 // pred_region
      %82 = dma.done [#allocation10], 16
    $region41: #{prenorm_linear.1} parent=1 // pred_fallthru
      _
    %p83 = scmp.eq.s32.totalorder 0, 0
    // Predicated region
    $region42: #{prenorm_linear.1} parent=1 // pred_check
      %p84 = pneg %p83
    $region43: #{prenorm_linear.1} parent=1 // pred_check_branch
      %86 = sbr.rel (%p84) target = $region45
    $region44: #{prenorm_linear.1} parent=1 // pred_region
      %v87 = vld [vmem:[#allocation3] sm:$0xff]
      %v88 = vld [vmem:[#allocation3 + $0x8] sm:$0xff]
      %vm89 = vcmask 261120
      %v90 = vsel %vm89, %v87, 0.0
      %91 = vadd.xlane.f32.xlu0 %v90
      %v92 = vpop.xlane.xlu0 %91
      %v93 = vsel %vm89, %v88, 0.0
      %94 = vadd.xlane.f32.xlu0 %v93
      %v95 = vpop.xlane.xlu0 %94
      %v96 = vmul.f32 %v87, %v87
      %v97 = vmul.f32 %v88, %v88
      %v98 = vsel %vm89, %v96, 0.0
      %99 = vadd.xlane.f32.xlu0 %v98
      %v100 = vpop.xlane.xlu0 %99
      %v101 = vsel %vm89, %v97, 0.0
      %102 = vadd.xlane.f32.xlu0 %v101
      %v103 = vpop.xlane.xlu0 %102
      %v104 = vmul.f32 %v92, 0.03125
      %v105 = vmul.f32 %v95, 0.03125
      %v106 = vmul.f32 %v100, 0.03125
      %v107 = vmul.f32 %v103, 0.03125
      %v108 = vmul.f32 %v104, %v104
      %v109 = vmul.f32 %v105, %v105
      %v110 = vsub.f32 %v106, %v108
      %v111 = vsub.f32 %v107, %v109
      %v112 = vadd.f32 %v110, 1e-05
      %v113 = vadd.f32 %v111, 1e-05
      %v114 = vrsqrt.pop %v112
      %v115 = vrsqrt.pop %v113
      %v116 = vld [vmem:[#allocation6] sm:$0x1]
      %v117 = vld [vmem:[#allocation8] sm:$0x1]
      %v118 = vsub.f32 %v87, %v104
      %v119 = vsub.f32 %v88, %v105
      %v120 = vmul.f32 %v118, %v114
      %v121 = vmul.f32 %v119, %v115
      %v123 = vlaneseq
      %v124 = vshrl.u32 %v123, 7
      %v125 = vsub.s32 0, %v124
      %v126 = vrot.slane %v116, %v125
      %v128 = vmul.f32 %v120, %v126
      %v129 = vmul.f32 %v121, %v126
      %v131 = vlaneseq
      %v132 = vshrl.u32 %v131, 7
      %v133 = vsub.s32 0, %v132
      %v134 = vrot.slane %v117, %v133
      %v136 = vadd.f32 %v128, %v134
      %v137 = vadd.f32 %v129, %v134
      %138 = vst.msk [vmem:[#allocation2] sm:$0xff] %vm89, %v136
      %139 = vst.msk [vmem:[#allocation2 + $0x8] sm:$0xff] %vm89, %v137
    $region45: #{prenorm_linear.1} parent=1 // pred_fallthru
      _
    %v140 = vld [vmem:[#allocation2] sm:$0xff]
    %v141 = vld [vmem:[#allocation2 + $0x8] sm:$0xff]
    %v142 = vld [vmem:[#allocation9] sm:$0xff]
    %v143 = vld [vmem:[#allocation9 + $0x8] sm:$0xff]
    %v144 = vld [vmem:[#allocation9 + $0x10] sm:$0xff]
    %v145 = vld [vmem:[#allocation9 + $0x18] sm:$0xff]
    %v146 = vld [vmem:[#allocation11] sm:$0x1]
    %v148 = vlaneseq
    %v149 = vshrl.u32 %v148, 7
    %v150 = vsub.s32 0, %v149
    %v151 = vrot.slane %v146, %v150
    %vm153 = vcmask 261120
    %v155 = vsel %vm153, %v140, 0
    %v158 = vsel %vm153, %v141, 0
    %160 = vmatprep.subr.mxu0 0.0
    %161 = vmatpush1.msra.mxu0 %v142
    %162 = vmatprep.subr.mxu0 0.0
    %163 = vmatpush1.msra.mxu0 %v143
    %164 = vmatprep.subr.mxu0 0.0
    %165 = vmatpush1.msra.mxu0 %v144
    %166 = vmatprep.subr.mxu0 0.0
    %167 = vmatpush1.msra.mxu0 %v145
    %168 = vmatprep.subr.mxu0 0.0
    %169 = vmatpush1.msra.mxu0 0.0
    %170 = vmatprep.subr.mxu0 0.0
    %171 = vmatpush1.msra.mxu0 0.0
    %172 = vmatprep.subr.mxu0 0.0
    %173 = vmatpush1.msra.mxu0 0.0
    %174 = vmatprep.subr.mxu0 0.0
    %175 = vmatpush1.msra.mxu0 0.0
    %176 = vmatprep.subr.mxu0 0.0
    %177 = vmatpush1.msra.mxu0 0.0
    %178 = vmatprep.subr.mxu0 0.0
    %179 = vmatpush1.msra.mxu0 0.0
    %180 = vmatprep.subr.mxu0 0.0
    %181 = vmatpush1.msra.mxu0 0.0
    %182 = vmatprep.subr.mxu0 0.0
    %183 = vmatpush1.msra.mxu0 0.0
    %184 = vmatprep.subr.mxu0 0.0
    %185 = vmatpush1.msra.mxu0 0.0
    %186 = vmatprep.subr.mxu0 0.0
    %187 = vmatpush1.msra.mxu0 0.0
    %188 = vmatprep.subr.mxu0 0.0
    %189 = vmatpush1.msra.mxu0 0.0
    %190 = vmatprep.subr.mxu0 0.0
    %191 = vmatpush1.msra.mxu0 0.0
    %192 = vmatprep.subr.mxu0 0.0
    %193 = vmatpush1.msra.mxu0 0.0
    %194 = vmatprep.subr.mxu0 0.0
    %195 = vmatpush1.msra.mxu0 0.0
    %196 = vmatprep.subr.mxu0 0.0
    %197 = vmatpush1.msra.mxu0 0.0
    %198 = vmatprep.subr.mxu0 0.0
    %199 = vmatpush1.msra.mxu0 0.0
    %200 = vmatprep.subr.mxu0 0.0
    %201 = vmatpush1.msra.mxu0 0.0
    %202 = vmatprep.subr.mxu0 0.0
    %203 = vmatpush1.msra.mxu0 0.0
    %204 = vmatprep.subr.mxu0 0.0
    %205 = vmatpush1.msra.mxu0 0.0
    %206 = vmatprep.subr.mxu0 0.0
    %207 = vmatpush1.msra.mxu0 0.0
    %208 = vmatprep.subr.mxu0 0.0
    %209 = vmatpush1.msra.mxu0 0.0
    %210 = vmatprep.subr.mxu0 0.0
    %211 = vmatpush1.msra.mxu0 0.0
    %212 = vmatprep.subr.mxu0 0.0
    %213 = vmatpush1.msra.mxu0 0.0
    %214 = vmatprep.subr.mxu0 0.0
    %215 = vmatpush1.msra.mxu0 0.0
    %216 = vmatprep.subr.mxu0 0.0
    %217 = vmatpush1.msra.mxu0 0.0
    %218 = vmatprep.subr.mxu0 0.0
    %219 = vmatpush1.msra.mxu0 0.0
    %220 = vmatprep.subr.mxu0 0.0
    %221 = vmatpush1.msra.mxu0 0.0
    %222 = vmatprep.subr.mxu0 0.0
    %223 = vmatpush1.msra.mxu0 0.0
    %224 = vmatprep.mubr.f32.mxu0 0.0
    %225 = vmatmul.mubr.f32.gmra.mrb[0].mxu0 %v155
    %v226 = vpop.f32.mrb[0].mxu0
    %v227 = vadd.f32 %v151, %v226
    %v228 = vpop.f32.mrb[0].mxu0
    %229 = vmatprep.mubr.f32.mxu0 0.0
    %230 = vmatmul.mubr.f32.gmra.mrb[0].mxu0 %v158
    %v231 = vpop.f32.mrb[0].mxu0
    %v232 = vadd.f32 %v151, %v231
    %v233 = vpop.f32.mrb[0].mxu0
    %234 = vdwg.mxu0
    %235 = vst [vmem:[#allocation12] sm:$0xff] %v227
    %236 = vst [vmem:[#allocation12 + $0x8] sm:$0xff] %v232
    // Predicated region
    $region46: #{prenorm_linear.1} parent=1 // pred_check
      _
    $region47: #{prenorm_linear.1} parent=1 // pred_check_branch
      %238 = sbr.rel (0) target = $region49
    $region48: #{prenorm_linear.1} parent=1 // pred_region
      %s240 = ssub.s32 256, 256
      %241 = vsyncadd [#allocation5], %s240
      %s242 = sshll.u32 [#allocation12], 4
      %s243 = int_to_ptr.vmem [resolvable:$true] %s242
      %248 = dma.vmem_to_hbm [thread:$0]  %s243, 256, %s5, [#allocation5], 128, 128, 8
    $region49: #{prenorm_linear.1} parent=1 // pred_fallthru
      _
    // Predicated region
    $region50: #{prenorm_linear.1} parent=1 // pred_check
      _
    $region51: #{prenorm_linear.1} parent=1 // pred_check_branch
      %250 = sbr.rel (0) target = $region53
    $region52: #{prenorm_linear.1} parent=1 // pred_region
      %251 = dma.done [#allocation5], 256
    $region53: #{prenorm_linear.1} parent=1 // pred_fallthru
      _
    %252 = vsyncpa [#allocation4], 1
    %253 = vsyncpa [#allocation7], 1
    %254 = vsyncpa [#allocation10], 1
    %255 = vsyncpa [#allocation5], 1

</llo_original>
